<compile_context>
chip_gen: v5e
topology: v5e:2x2
jax: 0.10.0
libtpu: 0.0.40
codegen_flags: <defaults>
</compile_context>

<pallas_src>
import jax
import jax.numpy as jnp
from jax import lax
from jax.experimental import pallas as pl
from jax.experimental.pallas import tpu as pltpu

_INV_SQRT2 = 0.7071067811865476  # 1/sqrt(2), compile-time immediate


def _ff_kernel(x_ref, w1_ref, b1_ref, w2_ref, b2_ref, o_ref):
    # hidden = x @ W1 + b1   (f32 accumulation on the MXU)
    h = jnp.dot(x_ref[...], w1_ref[...], preferred_element_type=jnp.float32)
    h = h + b1_ref[...]                      # b1 is (1, d_pad), broadcasts
    # exact GELU (matches torch.nn.GELU() default, erf-based)
    g = 0.5 * h * (1.0 + lax.erf(h * _INV_SQRT2))
    # output = gelu(hidden) @ W2 + b2
    out = jnp.dot(g, w2_ref[...], preferred_element_type=jnp.float32)
    out = out + b2_ref[...]                  # b2 is (1, n_out_pad), broadcasts
    o_ref[...] = out.astype(o_ref.dtype)


def _round_up(x, m):
    return ((x + m - 1) // m) * m


def test_model_forward(x, w1, b1, w2, b2, *, max_tile_m=512):
    """Pallas implementation of TestModel.forward (== Feedforward ff1).

    x:  (B, n_inputs)  float32
    w1: (n_inputs, d_model), b1: (d_model,)
    w2: (d_model, n_outputs), b2: (n_outputs,)
    returns (B, n_outputs) float32
    """
    B, n_in = x.shape
    d_model = w1.shape[1]
    n_out = w2.shape[1]

    # Lane-dense padding of the hidden and output feature dims (multiple of 128).
    d_pad = _round_up(d_model, 128)
    n_out_pad = _round_up(n_out, 128)

    # Batch tiling: one big tile for small B (grid of 1), capped at 512 rows.
    tile_m = min(max_tile_m, _round_up(B, 8))
    b_pad = _round_up(B, tile_m)

    x_p = x if b_pad == B else jnp.pad(x, ((0, b_pad - B), (0, 0)))
    w1_p = jnp.pad(w1, ((0, 0), (0, d_pad - d_model)))
    b1_p = jnp.pad(b1, (0, d_pad - d_model)).reshape(1, d_pad)
    w2_p = jnp.pad(w2, ((0, d_pad - d_model), (0, n_out_pad - n_out)))
    b2_p = jnp.pad(b2, (0, n_out_pad - n_out)).reshape(1, n_out_pad)

    grid = (b_pad // tile_m,)
    out_padded = pl.pallas_call(
        _ff_kernel,
        out_shape=jax.ShapeDtypeStruct((b_pad, n_out_pad), x.dtype),
        grid_spec=pltpu.PrefetchScalarGridSpec(
            num_scalar_prefetch=0,
            grid=grid,
            in_specs=[
                pl.BlockSpec((tile_m, n_in), lambda i: (i, 0)),        # x tile
                pl.BlockSpec((n_in, d_pad), lambda i: (0, 0)),         # W1 (resident)
                pl.BlockSpec((1, d_pad), lambda i: (0, 0)),            # b1 (resident)
                pl.BlockSpec((d_pad, n_out_pad), lambda i: (0, 0)),    # W2 (resident)
                pl.BlockSpec((1, n_out_pad), lambda i: (0, 0)),        # b2 (resident)
            ],
            out_specs=pl.BlockSpec((tile_m, n_out_pad), lambda i: (i, 0)),
        ),
        compiler_params=pltpu.CompilerParams(
            dimension_semantics=("parallel",)),
    )(x_p, w1_p, b1_p, w2_p, b2_p)

    return out_padded[:B, :n_out]


if __name__ == "__main__":
    # Small shapes consistent with the module: n_inputs=32, d_model=64, n_outputs=32
    n_inputs, d_model, n_outputs = 32, 64, 32
    batch = 8

    key = jax.random.PRNGKey(0)
    kx, k1, k2, k3, k4 = jax.random.split(key, 5)

    x = jax.random.normal(kx, (batch, n_inputs), dtype=jnp.float32)

    # Deterministic parameter init (synthetic; layout already transposed for x @ W)
    w1 = jax.random.normal(k1, (n_inputs, d_model), dtype=jnp.float32) * 0.05
    b1 = jax.random.normal(k2, (d_model,), dtype=jnp.float32) * 0.01
    w2 = jax.random.normal(k3, (d_model, n_outputs), dtype=jnp.float32) * 0.05
    b2 = jax.random.normal(k4, (n_outputs,), dtype=jnp.float32) * 0.01

    out = test_model_forward(x, w1, b1, w2, b2)
    jax.block_until_ready(out)

    # Reference check in plain JAX (exact-erf GELU, same as nn.GELU default)
    h_ref = x @ w1 + b1
    g_ref = 0.5 * h_ref * (1.0 + lax.erf(h_ref / jnp.sqrt(2.0)))
    ref = g_ref @ w2 + b2
    assert out.shape == ref.shape
    assert jnp.allclose(out, ref, atol=1e-5, rtol=1e-5), "mismatch vs reference"

    print("KERNEL_OK")
</pallas_src>

<mosaic_0001>
module attributes {stable_mosaic.version = 11 : i64} {
  func.func @_ff_kernel(%arg0: i32, %arg1: memref<8x32xf32, #tpu.memory_space<vmem>>, %arg2: memref<32x128xf32, #tpu.memory_space<vmem>>, %arg3: memref<1x128xf32, #tpu.memory_space<vmem>>, %arg4: memref<128x128xf32, #tpu.memory_space<vmem>>, %arg5: memref<1x128xf32, #tpu.memory_space<vmem>>, %arg6: memref<8x128xf32, #tpu.memory_space<vmem>>) attributes {dimension_semantics = [#tpu.dimension_semantics<parallel>], iteration_bounds = array<i64: 1>, scalar_prefetch = 0 : i64, scratch_operands = 0 : i64, tpu.core_type = #tpu.core_type<tc>, window_params = [{transform_indices = @transform_0, window_bounds = array<i64: 8, 32>}, {pipeline_mode = #tpu.pipeline_mode<synchronous>, transform_indices = @transform_1, window_bounds = array<i64: 32, 128>}, {pipeline_mode = #tpu.pipeline_mode<synchronous>, transform_indices = @transform_2, window_bounds = array<i64: 1, 128>}, {pipeline_mode = #tpu.pipeline_mode<synchronous>, transform_indices = @transform_3, window_bounds = array<i64: 128, 128>}, {pipeline_mode = #tpu.pipeline_mode<synchronous>, transform_indices = @transform_4, window_bounds = array<i64: 1, 128>}, {transform_indices = @transform_5, window_bounds = array<i64: 8, 128>}]} {
    %c0 = arith.constant 0 : index
    %c0_0 = arith.constant 0 : index
    %0 = vector.load %arg1[%c0, %c0_0] : memref<8x32xf32, #tpu.memory_space<vmem>>, vector<8x32xf32>
    %c0_1 = arith.constant 0 : index
    %c0_2 = arith.constant 0 : index
    %1 = vector.load %arg2[%c0_1, %c0_2] : memref<32x128xf32, #tpu.memory_space<vmem>>, vector<32x128xf32>
    %cst = arith.constant dense<0.000000e+00> : vector<8x128xf32>
    %2 = tpu.matmul %0, %1, %cst {dimension_numbers = #tpu.dot_dimension_numbers<[1], [0], [0], [1], [0, 0, 1, 1], [], []>} : vector<8x32xf32>, vector<32x128xf32>, vector<8x128xf32> -> vector<8x128xf32>
    %c0_3 = arith.constant 0 : index
    %c0_4 = arith.constant 0 : index
    %3 = vector.load %arg3[%c0_3, %c0_4] : memref<1x128xf32, #tpu.memory_space<vmem>>, vector<1x128xf32>
    %4 = vector.broadcast %3 : vector<1x128xf32> to vector<8x128xf32>
    %5 = arith.addf %2, %4 : vector<8x128xf32>
    %cst_5 = arith.constant 5.000000e-01 : f32
    %6 = vector.broadcast %cst_5 : f32 to vector<8x128xf32>
    %7 = arith.mulf %6, %5 : vector<8x128xf32>
    %cst_6 = arith.constant 0.707106769 : f32
    %8 = vector.broadcast %cst_6 : f32 to vector<8x128xf32>
    %9 = arith.mulf %5, %8 : vector<8x128xf32>
    %10 = math.erf %9 : vector<8x128xf32>
    %cst_7 = arith.constant 1.000000e+00 : f32
    %11 = vector.broadcast %cst_7 : f32 to vector<8x128xf32>
    %12 = arith.addf %11, %10 : vector<8x128xf32>
    %13 = arith.mulf %7, %12 : vector<8x128xf32>
    %c0_8 = arith.constant 0 : index
    %c0_9 = arith.constant 0 : index
    %14 = vector.load %arg4[%c0_8, %c0_9] : memref<128x128xf32, #tpu.memory_space<vmem>>, vector<128x128xf32>
    %cst_10 = arith.constant dense<0.000000e+00> : vector<8x128xf32>
    %15 = tpu.matmul %13, %14, %cst_10 {dimension_numbers = #tpu.dot_dimension_numbers<[1], [0], [0], [1], [0, 0, 1, 1], [], []>} : vector<8x128xf32>, vector<128x128xf32>, vector<8x128xf32> -> vector<8x128xf32>
    %c0_11 = arith.constant 0 : index
    %c0_12 = arith.constant 0 : index
    %16 = vector.load %arg5[%c0_11, %c0_12] : memref<1x128xf32, #tpu.memory_space<vmem>>, vector<1x128xf32>
    %17 = vector.broadcast %16 : vector<1x128xf32> to vector<8x128xf32>
    %18 = arith.addf %15, %17 : vector<8x128xf32>
    %c0_13 = arith.constant 0 : index
    %c0_14 = arith.constant 0 : index
    %19 = vector.load %arg6[%c0_13, %c0_14] : memref<8x128xf32, #tpu.memory_space<vmem>>, vector<8x128xf32>
    tpu.vector_store %arg6[%c0_13, %c0_14], %18 {strides = array<i32>} : memref<8x128xf32, #tpu.memory_space<vmem>>, vector<8x128xf32>,
    return
  }
  func.func @transform_0(%arg0: i32) -> (i32, i32) {
    %c0_i32 = arith.constant 0 : i32
    %c0_i32_0 = arith.constant 0 : i32
    return %arg0, %c0_i32 : i32, i32
  }
  func.func @transform_1(%arg0: i32) -> (i32, i32) {
    %c0_i32 = arith.constant 0 : i32
    %c0_i32_0 = arith.constant 0 : i32
    %c0_i32_1 = arith.constant 0 : i32
    return %c0_i32, %c0_i32_0 : i32, i32
  }
  func.func @transform_2(%arg0: i32) -> (i32, i32) {
    %c0_i32 = arith.constant 0 : i32
    %c0_i32_0 = arith.constant 0 : i32
    %c0_i32_1 = arith.constant 0 : i32
    return %c0_i32, %c0_i32_0 : i32, i32
  }
  func.func @transform_3(%arg0: i32) -> (i32, i32) {
    %c0_i32 = arith.constant 0 : i32
    %c0_i32_0 = arith.constant 0 : i32
    %c0_i32_1 = arith.constant 0 : i32
    return %c0_i32, %c0_i32_0 : i32, i32
  }
  func.func @transform_4(%arg0: i32) -> (i32, i32) {
    %c0_i32 = arith.constant 0 : i32
    %c0_i32_0 = arith.constant 0 : i32
    %c0_i32_1 = arith.constant 0 : i32
    return %c0_i32, %c0_i32_0 : i32, i32
  }
  func.func @transform_5(%arg0: i32) -> (i32, i32) {
    %c0_i32 = arith.constant 0 : i32
    %c0_i32_0 = arith.constant 0 : i32
    return %arg0, %c0_i32 : i32, i32
  }
}

</mosaic_0001>

<llo_original>
// kernel: tpu_custom_call.1
$region0: #{tpu_custom_call.1}
  #allocation0 [shape = 'u32[]', space=smem, size = 0x4, offset = 0x4, fixed_abs, tag = 'smem constant byte address 0x4 - core index']
  #allocation1 [shape = 'u32[72,128]{1,0:T(1,128)}', space=vmem, size = 0x9000, scoped, tag = 'internal scratch']
  %s0 = inlined_call_operand.hbm [shape: f32[8,32], index: 0, kind: input, shape index: {}]
  %s1 = inlined_call_operand.hbm [shape: f32[32,128], index: 1, kind: input, shape index: {}]
  %s2 = inlined_call_operand.vmem [shape: f32[1,128], index: 2, kind: input, shape index: {}]
  %s3 = inlined_call_operand.hbm [shape: f32[128,128], index: 3, kind: input, shape index: {}]
  %s4 = inlined_call_operand.vmem [shape: f32[1,128], index: 4, kind: input, shape index: {}]
  %s5 = inlined_call_operand.hbm [shape: f32[8,128], index: 5, kind: output, shape index: {}]
  %s6 = sld [smem:[#allocation0]]
  $region42: #{tpu_custom_call.1} parent=0
    _
  %s8 = ssub.s32 1, %s6
  %s9 = scalar_select 0, %s8, %s6
  $region1: #{tpu_custom_call.1} parent=0
    #allocation2 [shape = 'u8[4096]{0}', space=vmem, size = 0x1000, scoped, tag = 'input window, operand 0, single buffered']
    #allocation3 [shape = 's32[1]{0}', space=sflag, size = 0x4, scoped, tag = 'scoped memory for tpu_custom_call.1']
    #allocation4 [shape = 's32[1]{0}', space=sflag, size = 0x4, scoped, tag = 'scoped memory for tpu_custom_call.1']
    #allocation5 [shape = 'u8[16384]{0}', space=vmem, size = 0x4000, scoped, tag = 'input window, operand 1, single buffered']
    #allocation6 [shape = 's32[1]{0}', space=sflag, size = 0x4, scoped, tag = 'scoped memory for tpu_custom_call.1']
    #allocation7 [shape = 'u8[65536]{0}', space=vmem, size = 0x10000, scoped, tag = 'input window, operand 3, single buffered']
    #allocation8 [shape = 'u8[4096]{0}', space=vmem, size = 0x1000, scoped, tag = 'output window, operand 0, single buffered']
    %10 = vsyncpa [#allocation3], 0
    %11 = vsyncpa [#allocation6], 0
    %12 = vsyncpa [#allocation4], 0
    // Predicated region
    $region2: #{tpu_custom_call.1} parent=1 // pred_check
      _
    $region3: #{tpu_custom_call.1} parent=1 // pred_check_branch
      %14 = sbr.rel (0) target = $region5
    $region4: #{tpu_custom_call.1} parent=1 // pred_region
      %16 = vsyncadd [#allocation3], 0
      %s18 = sshll.u32 %s0, 4
      %s19 = int_to_ptr.hbm [resolvable:$true] %s18
      %s20 = sshll.u32 [#allocation2], 4
      %s21 = int_to_ptr.vmem [resolvable:$true] %s20
      %23 = dma.hbm_to_vmem [thread:$0]  %s19, 128, %s21, [#allocation3]
    $region5: #{tpu_custom_call.1} parent=1 // pred_fallthru
      _
    // Predicated region
    $region6: #{tpu_custom_call.1} parent=1 // pred_check
      _
    $region7: #{tpu_custom_call.1} parent=1 // pred_check_branch
      %25 = sbr.rel (0) target = $region9
    $region8: #{tpu_custom_call.1} parent=1 // pred_region
      %27 = vsyncadd [#allocation6], 0
      %s28 = sshll.u32 %s1, 4
      %s29 = int_to_ptr.hbm [resolvable:$true] %s28
      %s30 = sshll.u32 [#allocation5], 4
      %s31 = int_to_ptr.vmem [resolvable:$true] %s30
      %36 = dma.hbm_to_vmem [thread:$0]  %s29, 512, %s31, [#allocation6], 128, 128, 8
    $region9: #{tpu_custom_call.1} parent=1 // pred_fallthru
      _
    // Predicated region
    $region10: #{tpu_custom_call.1} parent=1 // pred_check
      _
    $region11: #{tpu_custom_call.1} parent=1 // pred_check_branch
      %38 = sbr.rel (0) target = $region13
    $region12: #{tpu_custom_call.1} parent=1 // pred_region
      _
    $region13: #{tpu_custom_call.1} parent=1 // pred_fallthru
      _
    // Predicated region
    $region14: #{tpu_custom_call.1} parent=1 // pred_check
      _
    $region15: #{tpu_custom_call.1} parent=1 // pred_check_branch
      %40 = sbr.rel (0) target = $region17
    $region16: #{tpu_custom_call.1} parent=1 // pred_region
      %42 = vsyncadd [#allocation6], 0
      %s43 = sshll.u32 %s3, 4
      %s44 = int_to_ptr.hbm [resolvable:$true] %s43
      %s45 = sshll.u32 [#allocation7], 4
      %s46 = int_to_ptr.vmem [resolvable:$true] %s45
      %51 = dma.hbm_to_vmem [thread:$0]  %s44, 2048, %s46, [#allocation6], 128, 128, 8
    $region17: #{tpu_custom_call.1} parent=1 // pred_fallthru
      _
    // Predicated region
    $region18: #{tpu_custom_call.1} parent=1 // pred_check
      _
    $region19: #{tpu_custom_call.1} parent=1 // pred_check_branch
      %53 = sbr.rel (0) target = $region21
    $region20: #{tpu_custom_call.1} parent=1 // pred_region
      _
    $region21: #{tpu_custom_call.1} parent=1 // pred_fallthru
      _
    // Predicated region
    $region22: #{tpu_custom_call.1} parent=1 // pred_check
      _
    $region23: #{tpu_custom_call.1} parent=1 // pred_check_branch
      %55 = sbr.rel (0) target = $region25
    $region24: #{tpu_custom_call.1} parent=1 // pred_region
      %57 = dma.done [#allocation3], 128
    $region25: #{tpu_custom_call.1} parent=1 // pred_fallthru
      _
    // Predicated region
    $region26: #{tpu_custom_call.1} parent=1 // pred_check
      _
    $region27: #{tpu_custom_call.1} parent=1 // pred_check_branch
      %59 = sbr.rel (0) target = $region29
    $region28: #{tpu_custom_call.1} parent=1 // pred_region
      %61 = dma.done [#allocation6], 512
    $region29: #{tpu_custom_call.1} parent=1 // pred_fallthru
      _
    // Predicated region
    $region30: #{tpu_custom_call.1} parent=1 // pred_check
      _
    $region31: #{tpu_custom_call.1} parent=1 // pred_check_branch
      %63 = sbr.rel (0) target = $region33
    $region32: #{tpu_custom_call.1} parent=1 // pred_region
      %65 = dma.done [#allocation6], 2048
    $region33: #{tpu_custom_call.1} parent=1 // pred_fallthru
      _
    %v66 = vld [vmem:[#allocation2] sm:$0xff]
    %v67 = vld [vmem:[#allocation5] sm:$0xff]
    %v68 = vld [vmem:[#allocation5 + $0x8] sm:$0xff]
    %v69 = vld [vmem:[#allocation5 + $0x10] sm:$0xff]
    %v70 = vld [vmem:[#allocation5 + $0x18] sm:$0xff]
    %v71 = vld [vmem:[%s2] sm:$0x1]
    %v73 = vperm.slane %v71, 0
    %vm75 = vcmask 261120
    %v77 = vsel %vm75, %v66, 0
    %79 = vmatpush.msra.mxu0 0.0
    %80 = vmatpush.msra.mxu0 0.0
    %81 = vmatpush.msra.mxu0 0.0
    %82 = vmatpush.msra.mxu0 0.0
    %83 = vmatpush.msra.mxu0 0.0
    %84 = vmatpush.msra.mxu0 0.0
    %85 = vmatpush.msra.mxu0 0.0
    %86 = vmatpush.msra.mxu0 0.0
    %87 = vmatpush.msra.mxu0 0.0
    %88 = vmatpush.msra.mxu0 0.0
    %89 = vmatpush.msra.mxu0 0.0
    %90 = vmatpush.msra.mxu0 0.0
    %91 = vmatpush.msra.mxu0 %v70
    %92 = vmatpush.msra.mxu0 %v69
    %93 = vmatpush.msra.mxu0 %v68
    %94 = vmatpush.msra.mxu0 %v67
    %95 = vmatmul.f32.gmra.mxu0 %v77
    %v96 = vpop.f32.mrf.mxu0
    %v97 = vadd.f32 %v73, %v96
    %98 = vdwg.mxu0
    %v99 = vmul.f32 %v97, 0.5
    %v100 = vmul.f32 %v97, 0.70710677
    %v101 = vmul.f32 %v100, %v100
    %v102 = vmin.f32 16.0, %v101
    %v103 = vmul.f32 %v102, 2.1237322e-06
    %v104 = vadd.f32 %v103, 0.00028619796
    %v105 = vmul.f32 %v102, %v104
    %v106 = vadd.f32 %v105, 0.0036580483
    %v107 = vmul.f32 %v102, %v106
    %v108 = vadd.f32 %v107, 0.05243302
    %v109 = vmul.f32 %v102, %v108
    %v110 = vadd.f32 %v109, 0.18741608
    %v111 = vmul.f32 %v102, %v110
    %v112 = vadd.f32 %v111, 1.1283791
    %v113 = vmul.f32 %v100, %v112
    %v114 = vmul.f32 %v102, 3.8918573e-05
    %v115 = vadd.f32 %v114, 0.001143296
    %v116 = vmul.f32 %v102, %v115
    %v117 = vadd.f32 %v116, 0.014752088
    %v118 = vmul.f32 %v102, %v117
    %v119 = vadd.f32 %v118, 0.112945676
    %v120 = vmul.f32 %v102, %v119
    %v121 = vadd.f32 %v120, 0.4994258
    %v122 = vmul.f32 %v102, %v121
    %v123 = vadd.f32 %v122, 1.0
    %v124 = vrcp.pop %v123
    %v125 = vmul.f32 %v123, %v124
    %v126 = vsub.f32 1.0, %v125
    %v127 = vmul.f32 %v124, %v126
    %v128 = vadd.f32 %v124, %v127
    %vm129 = vweird.f32 %v123
    %vm130 = vweird.f32 %v124
    %vm131 = vmor %vm129, %vm130
    %v132 = vsel %vm131, %v124, %v128
    %v133 = vand.u32 2147483647, %v123
    %vm134 = vcmp.eq.f32.partialorder %v133, 8.507059e+37
    %v135 = vand.u32 %v123, 2147483648
    %v136 = vor.u32 1.1754944e-38, %v135
    %v137 = vsel %vm134, %v136, %v132
    %v138 = vmul.f32 %v113, %v137
    %v139 = vmin.f32 %v138, 1.0
    %v140 = vmax.f32 %v139, -1.0
    %v141 = vadd.f32 %v140, 1.0
    %v142 = vmul.f32 %v99, %v141
    %v143 = vld [vmem:[#allocation7] sm:$0xff]
    %v144 = vld [vmem:[#allocation7 + $0x8] sm:$0xff]
    %v145 = vld [vmem:[#allocation7 + $0x10] sm:$0xff]
    %v146 = vld [vmem:[#allocation7 + $0x18] sm:$0xff]
    %v147 = vld [vmem:[#allocation7 + $0x20] sm:$0xff]
    %v148 = vld [vmem:[#allocation7 + $0x28] sm:$0xff]
    %v149 = vld [vmem:[#allocation7 + $0x30] sm:$0xff]
    %v150 = vld [vmem:[#allocation7 + $0x38] sm:$0xff]
    %v151 = vld [vmem:[#allocation7 + $0x40] sm:$0xff]
    %v152 = vld [vmem:[#allocation7 + $0x48] sm:$0xff]
    %v153 = vld [vmem:[#allocation7 + $0x50] sm:$0xff]
    %v154 = vld [vmem:[#allocation7 + $0x58] sm:$0xff]
    %v155 = vld [vmem:[#allocation7 + $0x60] sm:$0xff]
    %v156 = vld [vmem:[#allocation7 + $0x68] sm:$0xff]
    %v157 = vld [vmem:[#allocation7 + $0x70] sm:$0xff]
    %v158 = vld [vmem:[#allocation7 + $0x78] sm:$0xff]
    %v159 = vld [vmem:[%s4] sm:$0x1]
    %v161 = vperm.slane %v159, 0
    %163 = vmatpush.msra.mxu0 %v158
    %164 = vmatpush.msra.mxu0 %v157
    %165 = vmatpush.msra.mxu0 %v156
    %166 = vmatpush.msra.mxu0 %v155
    %167 = vmatpush.msra.mxu0 %v154
    %168 = vmatpush.msra.mxu0 %v153
    %169 = vmatpush.msra.mxu0 %v152
    %170 = vmatpush.msra.mxu0 %v151
    %171 = vmatpush.msra.mxu0 %v150
    %172 = vmatpush.msra.mxu0 %v149
    %173 = vmatpush.msra.mxu0 %v148
    %174 = vmatpush.msra.mxu0 %v147
    %175 = vmatpush.msra.mxu0 %v146
    %176 = vmatpush.msra.mxu0 %v145
    %177 = vmatpush.msra.mxu0 %v144
    %178 = vmatpush.msra.mxu0 %v143
    %179 = vmatmul.f32.gmra.mxu0 %v142
    %v180 = vpop.f32.mrf.mxu0
    %v181 = vadd.f32 %v161, %v180
    %182 = vdwg.mxu0
    %183 = vst [vmem:[#allocation8] sm:$0xff] %v181
    // Predicated region
    $region34: #{tpu_custom_call.1} parent=1 // pred_check
      _
    $region35: #{tpu_custom_call.1} parent=1 // pred_check_branch
      %185 = sbr.rel (0) target = $region37
    $region36: #{tpu_custom_call.1} parent=1 // pred_region
      %187 = vsyncadd [#allocation4], 0
      %s189 = sshll.u32 [#allocation8], 4
      %s190 = int_to_ptr.vmem [resolvable:$true] %s189
      %s191 = sshll.u32 %s5, 4
      %s192 = int_to_ptr.hbm [resolvable:$true] %s191
      %194 = dma.vmem_to_hbm [thread:$0]  %s190, 128, %s192, [#allocation4]
    $region37: #{tpu_custom_call.1} parent=1 // pred_fallthru
      _
    // Predicated region
    $region38: #{tpu_custom_call.1} parent=1 // pred_check
      _
    $region39: #{tpu_custom_call.1} parent=1 // pred_check_branch
      %196 = sbr.rel (0) target = $region41
    $region40: #{tpu_custom_call.1} parent=1 // pred_region
      %198 = dma.done [#allocation4], 128
    $region41: #{tpu_custom_call.1} parent=1 // pred_fallthru
      _
    %199 = vsyncpa [#allocation3], 1
    %200 = vsyncpa [#allocation6], 1
    %201 = vsyncpa [#allocation4], 1

</llo_original>
